<compile_context>
chip_gen: v7x
topology: tpu7x:2x2x1
jax: 0.10.0
libtpu: 0.0.40
codegen_flags: <defaults>
</compile_context>

<pallas_src>
import jax
import jax.numpy as jnp
from jax.experimental import pallas as pl
from jax.experimental.pallas import tpu as pltpu

_SINGLE_BLOCK_BYTES = 1 * 1024 * 1024   # below this, run grid=(1,) whole-array
_PER_BUFFER_BUDGET = 6 * 1024 * 1024    # ~6 MiB per x/out tile when tiling
_VMEM_LIMIT_BYTES = 48 * 1024 * 1024    # headroom under v7x's 64 MiB physical


def _lws_kernel(scale_ref, x_ref, o_ref):
    # scale_ref: (1, C) f32, resident across grid steps (index_map -> (0, 0)).
    # x_ref / o_ref: (TB, C) in x.dtype.
    # f32 * x.dtype promotes to f32 on the VPU; the sublane broadcast of the
    # scale row and the final cast ride VPU/XLU slots and are free at HBM
    # roofline. Pure overwrite of o_ref -> masked edge blocks are safe.
    o_ref[...] = (scale_ref[...] * x_ref[...]).astype(o_ref.dtype)


def _sublane_multiple(dtype):
    # Second-minor tiling multiple: 8 for 4-byte, 16 for 2-byte, 32 for 1-byte.
    itemsize = jnp.dtype(dtype).itemsize
    return {4: 8, 2: 16, 1: 32}.get(itemsize, 8)


def learnable_weight_scaling(x, learned_norm, *, block_rows=None):
    """Pallas forward: learned_norm (1, C) * x (B, C) -> (B, C) in x.dtype."""
    B, C = x.shape
    assert learned_norm.shape == (1, C)

    # Keep the parameter in f32 so the multiply is done at full precision
    # (PyTorch-style promotion); only the stored result is cast to x.dtype.
    scale = learned_norm.astype(jnp.float32)

    sub = _sublane_multiple(x.dtype)
    itemsize = jnp.dtype(x.dtype).itemsize
    bytes_per_row = C * itemsize

    if block_rows is not None:
        # Explicit tile request (mainly for testing the tiled path).
        if B <= sub or block_rows >= B:
            tb = B
        else:
            tb = max(sub, (min(block_rows, B) // sub) * sub)
    elif B * bytes_per_row <= _SINGLE_BLOCK_BYTES or B <= 2 * sub:
        # Real CIFAR-LT-head regime: one block covering the whole array.
        tb = B
    else:
        # Streaming regime: big tiles to amortize the ~0.35 us per-step
        # overhead, but at least ~4 grid steps so v7x's 2 TCs both get work.
        max_rows_by_vmem = max(sub, _PER_BUFFER_BUDGET // bytes_per_row)
        quarter = -(-B // 4)
        tb = min(max_rows_by_vmem, quarter)
        tb = max(sub, (tb // sub) * sub)
        if tb >= B:
            tb = B

    grid = (pl.cdiv(B, tb),)

    return pl.pallas_call(
        _lws_kernel,
        out_shape=jax.ShapeDtypeStruct((B, C), x.dtype),
        grid=grid,
        in_specs=[
            pl.BlockSpec((1, C), lambda i: (0, 0)),    # scale: resident, f32
            pl.BlockSpec((tb, C), lambda i: (i, 0)),   # x: tiled over batch
        ],
        out_specs=pl.BlockSpec((tb, C), lambda i: (i, 0)),
        compiler_params=pltpu.CompilerParams(
            dimension_semantics=("parallel",),
            vmem_limit_bytes=_VMEM_LIMIT_BYTES,
        ),
    )(scale, x)


if __name__ == "__main__":
    key = jax.random.PRNGKey(0)
    kx1, ks1, kx2, ks2, kx3, ks3 = jax.random.split(key, 6)

    # --- Test 1: CIFAR-10-LT head, f32, tiny batch -> single-block path. ---
    batch, num_classes = 4, 10
    x1 = jax.random.normal(kx1, (batch, num_classes), dtype=jnp.float32)
    ln1 = jnp.ones((1, num_classes), dtype=jnp.float32) \
        + 0.1 * jax.random.normal(ks1, (1, num_classes), dtype=jnp.float32)

    out1 = jax.block_until_ready(learnable_weight_scaling(x1, ln1))
    ref1 = ln1 * x1
    assert out1.shape == (batch, num_classes)
    assert out1.dtype == jnp.float32
    assert jnp.allclose(out1, ref1, atol=1e-6, rtol=1e-6)

    # --- Test 2: CIFAR-100-LT head, bf16 logits, forced tiling with a partial
    #     last batch block and an un-padded (C=100) lane dim. ---
    batch2, num_classes2 = 1037, 100
    x2 = jax.random.normal(kx2, (batch2, num_classes2), dtype=jnp.bfloat16)
    ln2 = jnp.ones((1, num_classes2), dtype=jnp.float32) \
        + 0.1 * jax.random.normal(ks2, (1, num_classes2), dtype=jnp.float32)

    out2 = jax.block_until_ready(
        learnable_weight_scaling(x2, ln2, block_rows=256))
    ref2 = (ln2 * x2).astype(jnp.bfloat16)   # f32 multiply, bf16 store
    assert out2.shape == (batch2, num_classes2)
    assert out2.dtype == jnp.bfloat16
    assert jnp.allclose(out2.astype(jnp.float32),
                        ref2.astype(jnp.float32), atol=1e-2, rtol=1e-2)

    # --- Test 3: larger batch -> auto-tiled streaming path (big tiles,
    #     multiple grid steps, partial-block-free). ---
    batch3, num_classes3 = 8192, 64
    x3 = jax.random.normal(kx3, (batch3, num_classes3), dtype=jnp.float32)
    ln3 = jnp.ones((1, num_classes3), dtype=jnp.float32) \
        + 0.1 * jax.random.normal(ks3, (1, num_classes3), dtype=jnp.float32)

    out3 = jax.block_until_ready(learnable_weight_scaling(x3, ln3))
    ref3 = ln3 * x3
    assert out3.shape == (batch3, num_classes3)
    assert jnp.allclose(out3, ref3, atol=1e-6, rtol=1e-6)

    print("KERNEL_OK")
</pallas_src>

<mosaic_0001>
module attributes {stable_mosaic.version = 11 : i64} {
  func.func @_lws_kernel(%arg0: i32, %arg1: memref<1x10xf32, #tpu.memory_space<vmem>>, %arg2: memref<4x10xf32, #tpu.memory_space<vmem>>, %arg3: memref<4x10xf32, #tpu.memory_space<vmem>>) attributes {dimension_semantics = [#tpu.dimension_semantics<parallel>], iteration_bounds = array<i64: 1>, scalar_prefetch = 0 : i64, scratch_operands = 0 : i64, tpu.core_type = #tpu.core_type<tc>, window_params = [{pipeline_mode = #tpu.pipeline_mode<synchronous>, transform_indices = @transform_0, window_bounds = array<i64: 1, 10>}, {transform_indices = @transform_1, window_bounds = array<i64: 4, 10>}, {transform_indices = @transform_2, window_bounds = array<i64: 4, 10>}]} {
    %c0 = arith.constant 0 : index
    %c0_0 = arith.constant 0 : index
    %0 = vector.load %arg1[%c0, %c0_0] : memref<1x10xf32, #tpu.memory_space<vmem>>, vector<1x10xf32>
    %c0_1 = arith.constant 0 : index
    %c0_2 = arith.constant 0 : index
    %1 = vector.load %arg2[%c0_1, %c0_2] : memref<4x10xf32, #tpu.memory_space<vmem>>, vector<4x10xf32>
    %2 = vector.broadcast %0 : vector<1x10xf32> to vector<4x10xf32>
    %3 = arith.mulf %2, %1 : vector<4x10xf32>
    %c0_3 = arith.constant 0 : index
    %c0_4 = arith.constant 0 : index
    %4 = vector.load %arg3[%c0_3, %c0_4] : memref<4x10xf32, #tpu.memory_space<vmem>>, vector<4x10xf32>
    tpu.vector_store %arg3[%c0_3, %c0_4], %3 {strides = array<i32>} : memref<4x10xf32, #tpu.memory_space<vmem>>, vector<4x10xf32>,
    return
  }
  func.func @transform_0(%arg0: i32) -> (i32, i32) {
    %c0_i32 = arith.constant 0 : i32
    %c0_i32_0 = arith.constant 0 : i32
    %c0_i32_1 = arith.constant 0 : i32
    return %c0_i32, %c0_i32_0 : i32, i32
  }
  func.func @transform_1(%arg0: i32) -> (i32, i32) {
    %c0_i32 = arith.constant 0 : i32
    %c0_i32_0 = arith.constant 0 : i32
    return %arg0, %c0_i32 : i32, i32
  }
  func.func @transform_2(%arg0: i32) -> (i32, i32) {
    %c0_i32 = arith.constant 0 : i32
    %c0_i32_0 = arith.constant 0 : i32
    return %arg0, %c0_i32 : i32, i32
  }
}

</mosaic_0001>

<llo_original>
// kernel: tpu_custom_call.1
$region0: #{tpu_custom_call.1}
  #allocation0 [shape = 'u32[]', space=smem, size = 0x4, offset = 0x4, fixed_abs, tag = 'smem constant byte address 0x4 - core index']
  #allocation1 [shape = 'u32[144,128]{1,0:T(1,128)}', space=vmem, size = 0x12000, scoped, tag = 'internal scratch']
  %s0 = inlined_call_operand.hbm [shape: f32[1,10], index: 0, kind: input, shape index: {}]
  %s1 = inlined_call_operand.hbm [shape: f32[4,10], index: 1, kind: input, shape index: {}]
  %s2 = inlined_call_operand.hbm [shape: f32[4,10], index: 2, kind: output, shape index: {}]
  %s3 = sld [smem:[#allocation0]]
  $region26: #{tpu_custom_call.1} parent=0
    _
  %s5 = ssub.s32 1, %s3
  %s6 = scalar_select 0, %s5, %s3
  $region1: #{tpu_custom_call.1} parent=0
    #allocation2 [shape = 'u8[512]{0}', space=vmem, size = 0x400, scoped, tag = 'input window, operand 0, single buffered']
    #allocation3 [shape = 's32[1]{0}', space=sflag, size = 0x4, scoped, tag = 'scoped memory for tpu_custom_call.1']
    #allocation4 [shape = 's32[1]{0}', space=sflag, size = 0x4, scoped, tag = 'scoped memory for tpu_custom_call.1']
    #allocation5 [shape = 'u8[2048]{0}', space=vmem, size = 0x800, scoped, tag = 'input window, operand 1, single buffered']
    #allocation6 [shape = 's32[1]{0}', space=sflag, size = 0x4, scoped, tag = 'scoped memory for tpu_custom_call.1']
    #allocation7 [shape = 'u8[2048]{0}', space=vmem, size = 0x800, scoped, tag = 'output window, operand 0, single buffered']
    %7 = vsyncpa [#allocation3], 0
    %8 = vsyncpa [#allocation6], 0
    %9 = vsyncpa [#allocation4], 0
    // Predicated region
    $region2: #{tpu_custom_call.1} parent=1 // pred_check
      _
    $region3: #{tpu_custom_call.1} parent=1 // pred_check_branch
      %11 = sbr.rel (0) target = $region5
    $region4: #{tpu_custom_call.1} parent=1 // pred_region
      %s13 = ssub.s32 16, 16
      %14 = vsyncadd [#allocation3], %s13
      %s16 = sshll.u32 [#allocation2], 4
      %s17 = int_to_ptr.vmem [resolvable:$true] %s16
      %19 = dma.hbm_to_vmem [thread:$0]  %s0, 16, %s17, [#allocation3]
    $region5: #{tpu_custom_call.1} parent=1 // pred_fallthru
      _
    // Predicated region
    $region6: #{tpu_custom_call.1} parent=1 // pred_check
      _
    $region7: #{tpu_custom_call.1} parent=1 // pred_check_branch
      %21 = sbr.rel (0) target = $region9
    $region8: #{tpu_custom_call.1} parent=1 // pred_region
      %s23 = ssub.s32 64, 64
      %24 = vsyncadd [#allocation6], %s23
      %s26 = sshll.u32 [#allocation5], 4
      %s27 = int_to_ptr.vmem [resolvable:$true] %s26
      %29 = dma.hbm_to_vmem [thread:$0]  %s1, 64, %s27, [#allocation6]
    $region9: #{tpu_custom_call.1} parent=1 // pred_fallthru
      _
    // Predicated region
    $region10: #{tpu_custom_call.1} parent=1 // pred_check
      _
    $region11: #{tpu_custom_call.1} parent=1 // pred_check_branch
      %31 = sbr.rel (0) target = $region13
    $region12: #{tpu_custom_call.1} parent=1 // pred_region
      %32 = dma.done [#allocation3], 16
    $region13: #{tpu_custom_call.1} parent=1 // pred_fallthru
      _
    // Predicated region
    $region14: #{tpu_custom_call.1} parent=1 // pred_check
      _
    $region15: #{tpu_custom_call.1} parent=1 // pred_check_branch
      %34 = sbr.rel (0) target = $region17
    $region16: #{tpu_custom_call.1} parent=1 // pred_region
      %35 = dma.done [#allocation6], 64
    $region17: #{tpu_custom_call.1} parent=1 // pred_fallthru
      _
    %v36 = vld [vmem:[#allocation2] sm:$0x1]
    %v37 = vld [vmem:[#allocation5] sm:$0xf]
    %v39 = vlaneseq
    %v40 = vshrl.u32 %v39, 7
    %v41 = vsub.s32 0, %v40
    %v42 = vrot.slane %v36, %v41
    %v44 = vmul.f32 %v42, %v37
    %vm45 = vcmask 76800
    %46 = vst.msk [vmem:[#allocation7] sm:$0xf] %vm45, %v44
    // Predicated region
    $region18: #{tpu_custom_call.1} parent=1 // pred_check
      _
    $region19: #{tpu_custom_call.1} parent=1 // pred_check_branch
      %48 = sbr.rel (0) target = $region21
    $region20: #{tpu_custom_call.1} parent=1 // pred_region
      %s50 = ssub.s32 64, 64
      %51 = vsyncadd [#allocation4], %s50
      %s53 = sshll.u32 [#allocation7], 4
      %s54 = int_to_ptr.vmem [resolvable:$true] %s53
      %56 = dma.vmem_to_hbm [thread:$0]  %s54, 64, %s2, [#allocation4]
    $region21: #{tpu_custom_call.1} parent=1 // pred_fallthru
      _
    // Predicated region
    $region22: #{tpu_custom_call.1} parent=1 // pred_check
      _
    $region23: #{tpu_custom_call.1} parent=1 // pred_check_branch
      %58 = sbr.rel (0) target = $region25
    $region24: #{tpu_custom_call.1} parent=1 // pred_region
      %59 = dma.done [#allocation4], 64
    $region25: #{tpu_custom_call.1} parent=1 // pred_fallthru
      _
    %60 = vsyncpa [#allocation3], 1
    %61 = vsyncpa [#allocation6], 1
    %62 = vsyncpa [#allocation4], 1

</llo_original>
